<compile_context>
chip_gen: v6e
topology: v6e:2x2x1
jax: 0.10.0
libtpu: 0.0.40
codegen_flags: <defaults>
</compile_context>

<pallas_src>
import numpy as np
import jax
import jax.numpy as jnp
from jax.experimental import pallas as pl
from jax.experimental.pallas import tpu as pltpu


def _copy_kernel(x_ref, o_ref):
    # Observer.forward is `return x` — a pure copy of the current tile.
    o_ref[...] = x_ref[...]


def _flatten_lane_dense(x: jax.Array) -> jax.Array:
    """Flatten to 2-D with a lane-dense (multiple-of-128) last dim when possible."""
    total = int(x.size)
    for c in (1024, 512, 256, 128):
        if total % c == 0:
            return x.reshape(total // c, c)
    # Fallback: one full-extent row (legal via the full-array-dim exception).
    return x.reshape(1, total)


def _pick_row_tile(rows: int, cols: int, itemsize: int) -> int:
    """Largest multiple-of-8 row tile giving ~<=2 MiB blocks (or full extent)."""
    if rows % 8 != 0:
        return rows  # full extent (legal; only hit on tiny/odd inputs)
    target_bytes = 2 << 20
    tr = max(8, (target_bytes // max(1, cols * itemsize)) // 8 * 8)
    return min(rows, tr)


def observer_forward(x: jax.Array, name=None, *, emit_kernel: bool = False) -> jax.Array:
    """Pallas equivalent of Observer.forward (identity). `name` is unused,
    mirroring the PyTorch module's debugging-only attribute.

    Default: pure passthrough — no kernel, no HBM traffic (the dominant win).
    emit_kernel=True: explicit Pallas copy kernel, kept only to preserve a
    custom-call boundary for profiling/debugging.
    """
    if not emit_kernel:
        return x

    orig_shape = x.shape
    x2 = _flatten_lane_dense(x)
    R, C = x2.shape
    tr = _pick_row_tile(R, C, x2.dtype.itemsize)
    grid = (pl.cdiv(R, tr),)

    out2 = pl.pallas_call(
        _copy_kernel,
        out_shape=jax.ShapeDtypeStruct((R, C), x2.dtype),
        grid=grid,
        in_specs=[pl.BlockSpec((tr, C), lambda i: (i, 0))],
        out_specs=pl.BlockSpec((tr, C), lambda i: (i, 0)),
        input_output_aliases={0: 0},  # reuse the input HBM buffer for the output
        compiler_params=pltpu.CompilerParams(
            dimension_semantics=("parallel",)
        ),
    )(x2)

    return out2.reshape(orig_shape)


if __name__ == "__main__":
    key = jax.random.PRNGKey(0)
    # Small NCHW-shaped input consistent with typical Observer usage
    # (it is inserted between layers for debugging).
    x = jax.random.normal(key, (2, 4, 16, 16), dtype=jnp.float32)
    x_host = np.asarray(x)  # host reference (kernel path may alias the device buffer)

    # 1) Default / recommended path: identity with no kernel launched.
    y_fast = jax.block_until_ready(observer_forward(x, name="debug_observer"))
    assert y_fast.shape == x.shape and y_fast.dtype == x.dtype
    assert np.array_equal(np.asarray(y_fast), x_host)

    # 2) Explicit Pallas kernel path (profiling boundary): bit-exact copy.
    y_kern = jax.block_until_ready(
        observer_forward(x, name="debug_observer", emit_kernel=True)
    )
    assert y_kern.shape == x.shape and y_kern.dtype == x.dtype
    assert np.array_equal(np.asarray(y_kern), x_host)

    print("KERNEL_OK")
</pallas_src>

<mosaic_0001>
module attributes {stable_mosaic.version = 11 : i64} {
  func.func @_copy_kernel(%arg0: i32, %arg1: memref<2x1024xf32, #tpu.memory_space<vmem>>, %arg2: memref<2x1024xf32, #tpu.memory_space<vmem>>) attributes {dimension_semantics = [#tpu.dimension_semantics<parallel>], iteration_bounds = array<i64: 1>, scalar_prefetch = 0 : i64, scratch_operands = 0 : i64, tpu.core_type = #tpu.core_type<tc>, window_params = [{transform_indices = @transform_0, window_bounds = array<i64: 2, 1024>}, {transform_indices = @transform_1, window_bounds = array<i64: 2, 1024>}]} {
    %c0 = arith.constant 0 : index
    %c0_0 = arith.constant 0 : index
    %0 = vector.load %arg1[%c0, %c0_0] : memref<2x1024xf32, #tpu.memory_space<vmem>>, vector<2x1024xf32>
    %c0_1 = arith.constant 0 : index
    %c0_2 = arith.constant 0 : index
    %1 = vector.load %arg2[%c0_1, %c0_2] : memref<2x1024xf32, #tpu.memory_space<vmem>>, vector<2x1024xf32>
    tpu.vector_store %arg2[%c0_1, %c0_2], %0 {strides = array<i32>} : memref<2x1024xf32, #tpu.memory_space<vmem>>, vector<2x1024xf32>,
    return
  }
  func.func @transform_0(%arg0: i32) -> (i32, i32) {
    %c0_i32 = arith.constant 0 : i32
    %c0_i32_0 = arith.constant 0 : i32
    return %arg0, %c0_i32 : i32, i32
  }
  func.func @transform_1(%arg0: i32) -> (i32, i32) {
    %c0_i32 = arith.constant 0 : i32
    %c0_i32_0 = arith.constant 0 : i32
    return %arg0, %c0_i32 : i32, i32
  }
}

</mosaic_0001>

<llo_original>
// kernel: tpu_custom_call.1
$region0: #{tpu_custom_call.1}
  #allocation0 [shape = 'u32[]', space=smem, size = 0x4, offset = 0x4, fixed_abs, tag = 'smem constant byte address 0x4 - core index']
  #allocation1 [shape = 'u32[144,128]{1,0:T(1,128)}', space=vmem, size = 0x12000, scoped, tag = 'internal scratch']
  %s0 = inlined_call_operand.hbm [shape: f32[2,1024], index: 0, kind: input, shape index: {}, may-alias: {0,1}]
  %s1 = inlined_call_operand.hbm [shape: f32[2,1024], index: 1, kind: output, shape index: {}, may-alias: {0,1}]
  %s2 = sld [smem:[#allocation0]]
  $region18: #{tpu_custom_call.1} parent=0
    _
  %s4 = ssub.s32 1, %s2
  %s5 = scalar_select 0, %s4, %s2
  $region1: #{tpu_custom_call.1} parent=0
    #allocation2 [shape = 'u8[8192]{0}', space=vmem, size = 0x2000, scoped, tag = 'input window, operand 0, single buffered']
    #allocation3 [shape = 's32[1]{0}', space=sflag, size = 0x4, scoped, tag = 'scoped memory for tpu_custom_call.1']
    #allocation4 [shape = 's32[1]{0}', space=sflag, size = 0x4, scoped, tag = 'scoped memory for tpu_custom_call.1']
    #allocation5 [shape = 'u8[8192]{0}', space=vmem, size = 0x2000, scoped, tag = 'output window, operand 0, single buffered']
    %6 = vsyncpa [#allocation3], 0
    %7 = vsyncpa [#allocation4], 0
    // Predicated region
    $region2: #{tpu_custom_call.1} parent=1 // pred_check
      _
    $region3: #{tpu_custom_call.1} parent=1 // pred_check_branch
      %9 = sbr.rel (0) target = $region5
    $region4: #{tpu_custom_call.1} parent=1 // pred_region
      %s11 = ssub.s32 256, 256
      %12 = vsyncadd [#allocation3], %s11
      %s14 = sshll.u32 [#allocation2], 4
      %s15 = int_to_ptr.vmem [resolvable:$true] %s14
      %17 = dma.hbm_to_vmem [thread:$0]  %s0, 256, %s15, [#allocation3]
    $region5: #{tpu_custom_call.1} parent=1 // pred_fallthru
      _
    // Predicated region
    $region6: #{tpu_custom_call.1} parent=1 // pred_check
      _
    $region7: #{tpu_custom_call.1} parent=1 // pred_check_branch
      %19 = sbr.rel (0) target = $region9
    $region8: #{tpu_custom_call.1} parent=1 // pred_region
      %20 = dma.done [#allocation3], 256
    $region9: #{tpu_custom_call.1} parent=1 // pred_fallthru
      _
    %v21 = vld [vmem:[#allocation2] sm:$0xff]
    %v22 = vld [vmem:[#allocation2 + $0x8] sm:$0xff]
    %23 = vst [vmem:[#allocation5] sm:$0xff] %v21
    %24 = vst [vmem:[#allocation5 + $0x8] sm:$0xff] %v22
    // Predicated region
    $region10: #{tpu_custom_call.1} parent=1 // pred_check
      _
    $region11: #{tpu_custom_call.1} parent=1 // pred_check_branch
      %26 = sbr.rel (0) target = $region13
    $region12: #{tpu_custom_call.1} parent=1 // pred_region
      %s28 = ssub.s32 256, 256
      %29 = vsyncadd [#allocation4], %s28
      %s31 = sshll.u32 [#allocation5], 4
      %s32 = int_to_ptr.vmem [resolvable:$true] %s31
      %34 = dma.vmem_to_hbm [thread:$0]  %s32, 256, %s1, [#allocation4]
    $region13: #{tpu_custom_call.1} parent=1 // pred_fallthru
      _
    // Predicated region
    $region14: #{tpu_custom_call.1} parent=1 // pred_check
      _
    $region15: #{tpu_custom_call.1} parent=1 // pred_check_branch
      %36 = sbr.rel (0) target = $region17
    $region16: #{tpu_custom_call.1} parent=1 // pred_region
      %37 = dma.done [#allocation4], 256
    $region17: #{tpu_custom_call.1} parent=1 // pred_fallthru
      _
    %38 = vsyncpa [#allocation3], 1
    %39 = vsyncpa [#allocation4], 1

</llo_original>
